<compile_context>
chip_gen: v5e
topology: v5e:2x2
jax: 0.10.0
libtpu: 0.0.40
codegen_flags: <defaults>
</compile_context>

<pallas_src>
import functools

import jax
import jax.numpy as jnp
from jax import lax
from jax.experimental import pallas as pl
from jax.experimental.pallas import tpu as pltpu


def _noise_kernel(noise_range, hw_total, seed_ref, x_ref, o_ref):
    # x_ref / o_ref: (TB, C, tile_hw) tile.
    i = pl.program_id(0)          # batch-block index
    j = pl.program_id(1)          # spatial-tile index
    tb = x_ref.shape[0]
    tile_hw = x_ref.shape[-1]

    # Global (batch, spatial) position for every fiber in this tile.
    b_idx = lax.broadcasted_iota(jnp.int32, (tb, 1, tile_hw), 0) + i * tb
    s_idx = lax.broadcasted_iota(jnp.int32, (tb, 1, tile_hw), 2) + j * tile_hw
    fiber = (b_idx * hw_total + s_idx).astype(jnp.uint32)

    # Mix with the seed, then murmur3 finalizer (good avalanche, pure VPU ops).
    seed_u = seed_ref[0].astype(jnp.uint32) * jnp.uint32(0x9E3779B9)
    h = fiber ^ seed_u
    h = h ^ (h >> 16)
    h = h * jnp.uint32(0x85EBCA6B)
    h = h ^ (h >> 13)
    h = h * jnp.uint32(0xC2B2AE35)
    h = h ^ (h >> 16)

    # Exponent stuffing: top 23 random bits -> float32 in [1, 2), minus 1 -> [0, 1).
    fbits = (h >> 9) | jnp.uint32(0x3F800000)
    u01 = lax.bitcast_convert_type(fbits, jnp.float32) - 1.0
    noise = u01 * (2.0 * noise_range) - noise_range          # uniform in [-r, r)

    # Broadcast the per-fiber noise across the channel (sublane) axis.
    o_ref[...] = x_ref[...] + noise.astype(x_ref.dtype)


def noise_forward(x, noise_range, seed=0):
    """x: float32 NCHW array. Returns x + per-fiber uniform noise in [-r, r)."""
    B, C, H, W = x.shape
    HW = H * W
    x2 = x.reshape(B, C, HW)
    seed_arr = jnp.asarray([seed], dtype=jnp.int32)

    # Spatial tile: lane-dense, capped so blocks stay a few MiB (fits any VMEM config).
    tile_hw = HW if HW <= 2048 else 2048
    # Pack batches when C under-fills the 8 sublanes of a vreg.
    tb = 1 if C >= 8 else min(B, max(1, 8 // C))

    grid = (pl.cdiv(B, tb), pl.cdiv(HW, tile_hw))
    kernel = functools.partial(_noise_kernel, float(noise_range), HW)

    out = pl.pallas_call(
        kernel,
        out_shape=jax.ShapeDtypeStruct((B, C, HW), x.dtype),
        grid_spec=pltpu.PrefetchScalarGridSpec(
            num_scalar_prefetch=1,
            grid=grid,
            in_specs=[
                pl.BlockSpec((tb, C, tile_hw), lambda i, j, seed: (i, 0, j)),
            ],
            out_specs=pl.BlockSpec((tb, C, tile_hw), lambda i, j, seed: (i, 0, j)),
        ),
        compiler_params=pltpu.CompilerParams(
            # Noise depends only on global indices + seed, so both axes are safe to
            # shard across TensorCores (v7x megacore); no-op on v5e/v6e.
            dimension_semantics=("parallel", "parallel"),
        ),
    )(seed_arr, x2)

    return out.reshape(B, C, H, W)


if __name__ == "__main__":
    key = jax.random.PRNGKey(0)
    B, C, H, W = 2, 4, 16, 16
    x = jax.random.normal(key, (B, C, H, W), dtype=jnp.float32)
    noise_range = 0.1

    y = noise_forward(x, noise_range, seed=0)
    y = jax.block_until_ready(y)

    # Sanity checks: shape/dtype preserved, noise bounded by noise_range,
    # identical across the channel (fiber) axis, and deterministic per seed.
    assert y.shape == x.shape and y.dtype == x.dtype
    delta = y - x
    assert float(jnp.max(jnp.abs(delta))) <= noise_range + 1e-6
    per_fiber_spread = jnp.max(jnp.abs(delta - delta[:, :1, :, :]))
    assert float(per_fiber_spread) < 1e-6
    y2 = jax.block_until_ready(noise_forward(x, noise_range, seed=0))
    assert float(jnp.max(jnp.abs(y - y2))) == 0.0

    print("KERNEL_OK")
</pallas_src>

<mosaic_0001>
module attributes {stable_mosaic.version = 11 : i64} {
  func.func @_noise_kernel(%arg0: i32, %arg1: i32, %arg2: memref<1xi32, #tpu.memory_space<smem>>, %arg3: memref<2x4x256xf32, #tpu.memory_space<vmem>>, %arg4: memref<2x4x256xf32, #tpu.memory_space<vmem>>) attributes {dimension_semantics = [#tpu.dimension_semantics<parallel>, #tpu.dimension_semantics<parallel>], iteration_bounds = array<i64: 1, 1>, scalar_prefetch = 1 : i64, scratch_operands = 0 : i64, tpu.core_type = #tpu.core_type<tc>, window_params = [{transform_indices = @transform_0, window_bounds = array<i64: 2, 4, 256>}, {transform_indices = @transform_1, window_bounds = array<i64: 2, 4, 256>}]} {
    %0 = tpu.iota {dimensions = array<i32: 0>} : vector<2x1x256xi32>
    %c2_i32 = arith.constant 2 : i32
    %1 = arith.muli %arg0, %c2_i32 : i32
    %2 = vector.broadcast %1 : i32 to vector<2x1x256xi32>
    %3 = arith.addi %0, %2 : vector<2x1x256xi32>
    %4 = tpu.iota {dimensions = array<i32: 2>} : vector<2x1x256xi32>
    %c256_i32 = arith.constant 256 : i32
    %5 = arith.muli %arg1, %c256_i32 : i32
    %6 = vector.broadcast %5 : i32 to vector<2x1x256xi32>
    %7 = arith.addi %4, %6 : vector<2x1x256xi32>
    %c256_i32_0 = arith.constant 256 : i32
    %8 = vector.broadcast %c256_i32_0 : i32 to vector<2x1x256xi32>
    %9 = arith.muli %3, %8 : vector<2x1x256xi32>
    %10 = arith.addi %9, %7 : vector<2x1x256xi32>
    %c0 = arith.constant 0 : index
    %11 = memref.load %arg2[%c0] : memref<1xi32, #tpu.memory_space<smem>>
    %c-1640531527_i32 = arith.constant -1640531527 : i32
    %12 = arith.muli %11, %c-1640531527_i32 : i32
    %13 = vector.broadcast %12 : i32 to vector<2x1x256xi32>
    %14 = arith.xori %10, %13 : vector<2x1x256xi32>
    %c16_i32 = arith.constant 16 : i32
    %15 = vector.broadcast %c16_i32 : i32 to vector<2x1x256xi32>
    %16 = arith.shrui %14, %15 : vector<2x1x256xi32>
    %17 = arith.xori %14, %16 : vector<2x1x256xi32>
    %c-2048144789_i32 = arith.constant -2048144789 : i32
    %18 = vector.broadcast %c-2048144789_i32 : i32 to vector<2x1x256xi32>
    %19 = arith.muli %17, %18 : vector<2x1x256xi32>
    %c13_i32 = arith.constant 13 : i32
    %20 = vector.broadcast %c13_i32 : i32 to vector<2x1x256xi32>
    %21 = arith.shrui %19, %20 : vector<2x1x256xi32>
    %22 = arith.xori %19, %21 : vector<2x1x256xi32>
    %c-1028477387_i32 = arith.constant -1028477387 : i32
    %23 = vector.broadcast %c-1028477387_i32 : i32 to vector<2x1x256xi32>
    %24 = arith.muli %22, %23 : vector<2x1x256xi32>
    %c16_i32_1 = arith.constant 16 : i32
    %25 = vector.broadcast %c16_i32_1 : i32 to vector<2x1x256xi32>
    %26 = arith.shrui %24, %25 : vector<2x1x256xi32>
    %27 = arith.xori %24, %26 : vector<2x1x256xi32>
    %c9_i32 = arith.constant 9 : i32
    %28 = vector.broadcast %c9_i32 : i32 to vector<2x1x256xi32>
    %29 = arith.shrui %27, %28 : vector<2x1x256xi32>
    %c1065353216_i32 = arith.constant 1065353216 : i32
    %30 = vector.broadcast %c1065353216_i32 : i32 to vector<2x1x256xi32>
    %31 = arith.ori %29, %30 : vector<2x1x256xi32>
    %32 = tpu.bitcast %31 : vector<2x1x256xi32> -> vector<2x1x256xf32>
    %cst = arith.constant 1.000000e+00 : f32
    %33 = vector.broadcast %cst : f32 to vector<2x1x256xf32>
    %34 = arith.subf %32, %33 : vector<2x1x256xf32>
    %cst_2 = arith.constant 2.000000e-01 : f32
    %35 = vector.broadcast %cst_2 : f32 to vector<2x1x256xf32>
    %36 = arith.mulf %34, %35 : vector<2x1x256xf32>
    %cst_3 = arith.constant 1.000000e-01 : f32
    %37 = vector.broadcast %cst_3 : f32 to vector<2x1x256xf32>
    %38 = arith.subf %36, %37 : vector<2x1x256xf32>
    %c0_4 = arith.constant 0 : index
    %c0_5 = arith.constant 0 : index
    %c0_6 = arith.constant 0 : index
    %39 = vector.load %arg3[%c0_4, %c0_5, %c0_6] : memref<2x4x256xf32, #tpu.memory_space<vmem>>, vector<2x4x256xf32>
    %40 = vector.broadcast %38 : vector<2x1x256xf32> to vector<2x4x256xf32>
    %41 = arith.addf %39, %40 : vector<2x4x256xf32>
    %c0_7 = arith.constant 0 : index
    %c0_8 = arith.constant 0 : index
    %c0_9 = arith.constant 0 : index
    %42 = vector.load %arg4[%c0_7, %c0_8, %c0_9] : memref<2x4x256xf32, #tpu.memory_space<vmem>>, vector<2x4x256xf32>
    tpu.vector_store %arg4[%c0_7, %c0_8, %c0_9], %41 {strides = array<i32>} : memref<2x4x256xf32, #tpu.memory_space<vmem>>, vector<2x4x256xf32>,
    return
  }
  func.func @transform_0(%arg0: i32, %arg1: i32, %arg2: memref<1xi32, #tpu.memory_space<smem>>) -> (i32, i32, i32) {
    %c0_i32 = arith.constant 0 : i32
    %c0_i32_0 = arith.constant 0 : i32
    return %arg0, %c0_i32, %arg1 : i32, i32, i32
  }
  func.func @transform_1(%arg0: i32, %arg1: i32, %arg2: memref<1xi32, #tpu.memory_space<smem>>) -> (i32, i32, i32) {
    %c0_i32 = arith.constant 0 : i32
    %c0_i32_0 = arith.constant 0 : i32
    return %arg0, %c0_i32, %arg1 : i32, i32, i32
  }
}

</mosaic_0001>

<llo_original>
// kernel: tpu_custom_call.1
$region0: #{tpu_custom_call.1}
  #allocation0 [shape = 'u32[]', space=smem, size = 0x4, offset = 0x4, fixed_abs, tag = 'smem constant byte address 0x4 - core index']
  #allocation1 [shape = 'u32[72,128]{1,0:T(1,128)}', space=vmem, size = 0x9000, scoped, tag = 'internal scratch']
  #allocation2 [shape = 's32[1]{0}', space=sflag, size = 0x4, scoped, tag = 'scoped memory for tpu_custom_call.1']
  #allocation3 [shape = 's32[1]{0:T(128)S(6)}', space=smem, size = 0x200, scoped, tag = 'prefetched SMEM operand 0']
  %s0 = inlined_call_operand.<no memory space> [shape: s32[1], index: 0, kind: input, shape index: {}]
  %s1 = inlined_call_operand.hbm [shape: f32[2,4,256], index: 1, kind: input, shape index: {}]
  %s2 = inlined_call_operand.hbm [shape: f32[2,4,256], index: 2, kind: output, shape index: {}]
  %s3 = sld [smem:[#allocation0]]
  $region18: #{tpu_custom_call.1} parent=0
    _
  %s5 = ssub.s32 1, %s3
  %s6 = scalar_select 0, %s5, %s3
  %7 = sst [smem:[#allocation3]] %s0
  $region1: #{tpu_custom_call.1} parent=0
    #allocation4 [shape = 'u8[8192]{0}', space=vmem, size = 0x2000, scoped, tag = 'input window, operand 1, single buffered']
    #allocation5 [shape = 's32[1]{0}', space=sflag, size = 0x4, scoped, tag = 'scoped memory for tpu_custom_call.1']
    #allocation6 [shape = 's32[1]{0}', space=sflag, size = 0x4, scoped, tag = 'scoped memory for tpu_custom_call.1']
    #allocation7 [shape = 'u8[8192]{0}', space=vmem, size = 0x2000, scoped, tag = 'output window, operand 0, single buffered']
    %8 = vsyncpa [#allocation5], 0
    %9 = vsyncpa [#allocation6], 0
    // Predicated region
    $region2: #{tpu_custom_call.1} parent=1 // pred_check
      _
    $region3: #{tpu_custom_call.1} parent=1 // pred_check_branch
      %11 = sbr.rel (0) target = $region5
    $region4: #{tpu_custom_call.1} parent=1 // pred_region
      %13 = vsyncadd [#allocation5], 0
      %s14 = sshll.u32 %s1, 4
      %s15 = int_to_ptr.hbm [resolvable:$true] %s14
      %s16 = sshll.u32 [#allocation4], 4
      %s17 = int_to_ptr.vmem [resolvable:$true] %s16
      %22 = dma.hbm_to_vmem [thread:$0]  %s15, 256, %s17, [#allocation5], 128, 128, 8
    $region5: #{tpu_custom_call.1} parent=1 // pred_fallthru
      _
    // Predicated region
    $region6: #{tpu_custom_call.1} parent=1 // pred_check
      _
    $region7: #{tpu_custom_call.1} parent=1 // pred_check_branch
      %24 = sbr.rel (0) target = $region9
    $region8: #{tpu_custom_call.1} parent=1 // pred_region
      %26 = dma.done [#allocation5], 256
    $region9: #{tpu_custom_call.1} parent=1 // pred_fallthru
      _
    %s27 = smul.u32 0, 2
    %v28 = vstv %s27
    %v29 = vadd.s32 %v28, 1
    %v30 = vlaneseq
    %v31 = vand.u32 %v30, 127
    %v32 = vadd.s32 %v31, 128
    %s33 = smul.u32 0, 256
    %v34 = vstv %s33
    %v35 = vadd.s32 %v31, %v34
    %v36 = vadd.s32 %v32, %v34
    %v37 = vmul.u32 %v28, 256
    %v38 = vmul.u32 %v29, 256
    %v39 = vadd.s32 %v37, %v35
    %v40 = vadd.s32 %v37, %v36
    %v41 = vadd.s32 %v38, %v35
    %v42 = vadd.s32 %v38, %v36
    %s43 = sld [smem:[#allocation3]]
    %s44 = smul.u32 %s43, 2654435769
    %v45 = vstv %s44
    %v46 = vxor.u32 %v39, %v45
    %v47 = vxor.u32 %v40, %v45
    %v48 = vxor.u32 %v41, %v45
    %v49 = vxor.u32 %v42, %v45
    %v50 = vshrl.u32 %v46, 16
    %v51 = vshrl.u32 %v47, 16
    %v52 = vshrl.u32 %v48, 16
    %v53 = vshrl.u32 %v49, 16
    %v54 = vxor.u32 %v46, %v50
    %v55 = vxor.u32 %v47, %v51
    %v56 = vxor.u32 %v48, %v52
    %v57 = vxor.u32 %v49, %v53
    %v58 = vmul.u32 %v54, 2246822507
    %v59 = vmul.u32 %v55, 2246822507
    %v60 = vmul.u32 %v56, 2246822507
    %v61 = vmul.u32 %v57, 2246822507
    %v62 = vshrl.u32 %v58, 13
    %v63 = vshrl.u32 %v59, 13
    %v64 = vshrl.u32 %v60, 13
    %v65 = vshrl.u32 %v61, 13
    %v66 = vxor.u32 %v58, %v62
    %v67 = vxor.u32 %v59, %v63
    %v68 = vxor.u32 %v60, %v64
    %v69 = vxor.u32 %v61, %v65
    %v70 = vmul.u32 %v66, 3266489909
    %v71 = vmul.u32 %v67, 3266489909
    %v72 = vmul.u32 %v68, 3266489909
    %v73 = vmul.u32 %v69, 3266489909
    %v74 = vshrl.u32 %v70, 16
    %v75 = vshrl.u32 %v71, 16
    %v76 = vshrl.u32 %v72, 16
    %v77 = vshrl.u32 %v73, 16
    %v78 = vxor.u32 %v70, %v74
    %v79 = vxor.u32 %v71, %v75
    %v80 = vxor.u32 %v72, %v76
    %v81 = vxor.u32 %v73, %v77
    %v82 = vshrl.u32 %v78, 9
    %v83 = vshrl.u32 %v79, 9
    %v84 = vshrl.u32 %v80, 9
    %v85 = vshrl.u32 %v81, 9
    %v86 = vor.u32 %v82, 1065353216
    %v87 = vor.u32 %v83, 1065353216
    %v88 = vor.u32 %v84, 1065353216
    %v89 = vor.u32 %v85, 1065353216
    %v94 = vsub.f32 %v86, 1.0
    %v95 = vsub.f32 %v87, 1.0
    %v96 = vsub.f32 %v88, 1.0
    %v97 = vsub.f32 %v89, 1.0
    %v98 = vmul.f32 %v94, 0.2
    %v99 = vmul.f32 %v95, 0.2
    %v100 = vmul.f32 %v96, 0.2
    %v101 = vmul.f32 %v97, 0.2
    %v102 = vsub.f32 %v98, 0.1
    %v103 = vsub.f32 %v99, 0.1
    %v104 = vsub.f32 %v100, 0.1
    %v105 = vsub.f32 %v101, 0.1
    %v106 = vld [vmem:[#allocation4] sm:$0xff]
    %v107 = vld [vmem:[#allocation4 + $0x8] sm:$0xff]
    %v112 = vrot.slane %v103, 4
    %v113 = vrot.slane %v105, 4
    %vm114 = vcmask 1043456
    %v115 = vsel %vm114, %v102, %v112
    %v116 = vsel %vm114, %v104, %v113
    %v119 = vadd.f32 %v106, %v115
    %v120 = vadd.f32 %v107, %v116
    %121 = vst [vmem:[#allocation7] sm:$0xff] %v119
    %122 = vst [vmem:[#allocation7 + $0x8] sm:$0xff] %v120
    // Predicated region
    $region10: #{tpu_custom_call.1} parent=1 // pred_check
      _
    $region11: #{tpu_custom_call.1} parent=1 // pred_check_branch
      %124 = sbr.rel (0) target = $region13
    $region12: #{tpu_custom_call.1} parent=1 // pred_region
      %126 = vsyncadd [#allocation6], 0
      %s127 = sshll.u32 [#allocation7], 4
      %s128 = int_to_ptr.vmem [resolvable:$true] %s127
      %s129 = sshll.u32 %s2, 4
      %s130 = int_to_ptr.hbm [resolvable:$true] %s129
      %135 = dma.vmem_to_hbm [thread:$0]  %s128, 256, %s130, [#allocation6], 128, 128, 8
    $region13: #{tpu_custom_call.1} parent=1 // pred_fallthru
      _
    // Predicated region
    $region14: #{tpu_custom_call.1} parent=1 // pred_check
      _
    $region15: #{tpu_custom_call.1} parent=1 // pred_check_branch
      %137 = sbr.rel (0) target = $region17
    $region16: #{tpu_custom_call.1} parent=1 // pred_region
      %139 = dma.done [#allocation6], 256
    $region17: #{tpu_custom_call.1} parent=1 // pred_fallthru
      _
    %140 = vsyncpa [#allocation5], 1
    %141 = vsyncpa [#allocation6], 1

</llo_original>
